<compile_context>
chip_gen: v7x
topology: tpu7x:2x2x1
jax: 0.10.0
libtpu: 0.0.40
codegen_flags: <defaults>
</compile_context>

<pallas_src>
import functools

import jax
import jax.numpy as jnp
from jax.experimental import pallas as pl
from jax.experimental.pallas import tpu as pltpu


_LANE = 128
_MIN_PALLAS_BYTES = 1 << 20  # below ~1 MiB, fused XLA wins (launch/DMA-setup cost)


def _sublane_packing(dtype) -> int:
    """Sublane pack factor: f32 -> 8, bf16/f16 -> 16, int8/fp8 -> 32."""
    return {4: 8, 2: 16, 1: 32}.get(jnp.dtype(dtype).itemsize, 8)


@functools.lru_cache(maxsize=1)
def _chip_profile():
    """Generation-aware tuning knobs, keyed off the local device kind."""
    kind = ""
    try:
        kind = jax.devices()[0].device_kind.lower()
    except Exception:  # no devices visible at trace time: conservative defaults
        pass
    if "v7" in kind:
        # 2 TensorCores/chip, 3.2 TB/s HBM, 64 MiB physical VMEM.
        return dict(tc_per_chip=2, block_bytes=8 << 20,
                    vmem_limit=40 << 20, native_16bit=True)
    if "v6" in kind:
        # 1 TC/chip, ~1.4 TB/s, 128 MiB VMEM, bf16 VPU/EUP available.
        return dict(tc_per_chip=1, block_bytes=4 << 20,
                    vmem_limit=64 << 20, native_16bit=True)
    if "v5 lite" in kind or "v5e" in kind or "v5lite" in kind:
        # 1 TC/chip; VPU/EUP lack bf16 -> upcast 16-bit inputs to f32.
        return dict(tc_per_chip=1, block_bytes=4 << 20,
                    vmem_limit=32 << 20, native_16bit=False)
    # Unknown (v4 / v5p / ...): assume a megacore-style 2-way parallel grid,
    # moderate blocks, and the safe f32 compute path for 16-bit inputs.
    return dict(tc_per_chip=2, block_bytes=4 << 20,
                vmem_limit=32 << 20, native_16bit=False)


def _swish_kernel(x_ref, o_ref, *, compute_dtype, approx_recip):
    x = x_ref[...].astype(compute_dtype)
    # swish(x) = x * sigmoid(x) = x / (1 + exp(-x)); exp rides the EUP slot.
    den = 1.0 + jnp.exp(-x)
    if approx_recip:
        # One EUP approximate reciprocal (f32-only op); its ~1e-4 relative error
        # is far below the rounding error of 16-bit outputs.
        sig = pl.reciprocal(den.astype(jnp.float32), approx=True).astype(compute_dtype)
    else:
        # Exact divide for f32 outputs: preserves the reference numerics.
        sig = 1.0 / den
    o_ref[...] = (x * sig).astype(o_ref.dtype)


def _swish_xla(x):
    return x * jax.nn.sigmoid(x)


def _swish_pallas_flat(flat, profile):
    """Run the kernel on a flat array whose length is a multiple of 128."""
    total = flat.shape[0]
    dtype = flat.dtype
    itemsize = jnp.dtype(dtype).itemsize
    packing = _sublane_packing(dtype)

    # Lane-dense column count (multiple of 128) that divides the element count,
    # so the 2D view is a free bitcast reshape (no HBM copy around the call).
    ncols = _LANE
    for c in (1024, 512, 256, _LANE):
        if total % c == 0:
            ncols = c
            break
    nrows = total // ncols
    x2d = flat.reshape(nrows, ncols)

    # Row-block sized for ~block_bytes per block (past the HBM-roofline knee and
    # amortizing the ~0.35 us per-grid-step overhead), packing-aligned.
    br = max(packing,
             (profile["block_bytes"] // (ncols * itemsize)) // packing * packing)

    if nrows <= br:
        if profile["tc_per_chip"] >= 2 and nrows >= 4 * packing:
            # Multi-TC chip: >= 2 roughly equal, packing-aligned blocks per core
            # so both TensorCores stream HBM concurrently (near-2x bandwidth).
            nblocks = 2 * profile["tc_per_chip"]
            br = pl.cdiv(pl.cdiv(nrows, nblocks), packing) * packing
        else:
            # Single-TC chip (or too small to split evenly): one full-extent
            # block — the grid is a serial loop there, extra steps are pure cost.
            br = nrows

    grid = (pl.cdiv(nrows, br),)

    kernel = functools.partial(
        _swish_kernel,
        compute_dtype=(dtype if (itemsize == 2 and profile["native_16bit"])
                       else jnp.float32),
        approx_recip=(itemsize <= 2),
    )

    out2d = pl.pallas_call(
        kernel,
        out_shape=jax.ShapeDtypeStruct((nrows, ncols), dtype),
        grid=grid,
        in_specs=[pl.BlockSpec((br, ncols), lambda i: (i, 0))],
        out_specs=pl.BlockSpec((br, ncols), lambda i: (i, 0)),
        compiler_params=pltpu.CompilerParams(
            dimension_semantics=("parallel",),
            vmem_limit_bytes=profile["vmem_limit"],
        ),
    )(x2d)
    return out2d.reshape(-1)


def swish(x, *, min_pallas_bytes=_MIN_PALLAS_BYTES):
    """Elementwise SWISH (x * sigmoid(x)) via a Pallas TPU kernel.

    Purely elementwise, so arbitrary-rank input is viewed as a lane-dense 2D
    slab and tiled along rows.
    """
    # TODO(synk): PyTorch `inplace=True` (x.mul_) has no JAX equivalent; this is
    # the functional forward (identical values returned).
    total = x.size
    if total == 0:
        return x

    # Tiny-input fast path: pallas_call launch / DMA-setup cost dominates and
    # XLA fuses the elementwise op anyway.
    if total * jnp.dtype(x.dtype).itemsize < min_pallas_bytes:
        return _swish_xla(x)

    profile = _chip_profile()
    orig_shape = x.shape
    flat = x.reshape(-1)  # free bitcast view
    rem = total % _LANE

    if rem == 0:
        return _swish_pallas_flat(flat, profile).reshape(orig_shape)

    # Ragged size: no pad/slice round trips — kernel handles the 128-aligned
    # prefix; the (<128-element) tail is plain fused XLA.
    n_main = total - rem
    if n_main == 0:
        return _swish_xla(x)
    main = _swish_pallas_flat(flat[:n_main], profile)
    tail = _swish_xla(flat[n_main:])
    return jnp.concatenate([main, tail]).reshape(orig_shape)


if __name__ == "__main__":
    key = jax.random.PRNGKey(0)
    k1, k2, k3, k4 = jax.random.split(key, 4)

    # (1) Small NCHW-style activation, forced through the Pallas kernel.
    x1 = jax.random.normal(k1, (2, 4, 16, 16), dtype=jnp.float32)
    y1 = jax.block_until_ready(swish(x1, min_pallas_bytes=0))
    r1 = x1 * jax.nn.sigmoid(x1)
    assert y1.shape == x1.shape and y1.dtype == x1.dtype
    assert jnp.allclose(y1, r1, atol=1e-5, rtol=1e-5)

    # (2) Ragged size (not a multiple of 128): kernel on the aligned prefix,
    #     XLA on the <128-element tail.
    x2 = jax.random.normal(k2, (4, 5, 67), dtype=jnp.float32)
    y2 = jax.block_until_ready(swish(x2, min_pallas_bytes=0))
    assert jnp.allclose(y2, x2 * jax.nn.sigmoid(x2), atol=1e-5, rtol=1e-5)

    # (3) bf16 input: native 16-bit compute on v6e/v7x, f32 upcast elsewhere.
    x3 = jax.random.normal(k3, (4, 16, 64), dtype=jnp.bfloat16)
    y3 = jax.block_until_ready(swish(x3, min_pallas_bytes=0))
    r3 = x3.astype(jnp.float32) * jax.nn.sigmoid(x3.astype(jnp.float32))
    assert y3.dtype == jnp.bfloat16 and y3.shape == x3.shape
    assert jnp.allclose(y3.astype(jnp.float32), r3, atol=5e-2, rtol=5e-2)

    # (4) Default path: tiny inputs take the fused-XLA fast path.
    x4 = jax.random.normal(k4, (2, 4, 16, 16), dtype=jnp.float32)
    y4 = jax.block_until_ready(swish(x4))
    assert jnp.allclose(y4, x4 * jax.nn.sigmoid(x4), atol=1e-5, rtol=1e-5)

    print("KERNEL_OK")
</pallas_src>

<mosaic_0001>
module attributes {stable_mosaic.version = 11 : i64} {
  func.func @_swish_kernel(%arg0: i32, %arg1: memref<2x1024xf32, #tpu.memory_space<vmem>>, %arg2: memref<2x1024xf32, #tpu.memory_space<vmem>>) attributes {dimension_semantics = [#tpu.dimension_semantics<parallel>], iteration_bounds = array<i64: 1>, scalar_prefetch = 0 : i64, scratch_operands = 0 : i64, tpu.core_type = #tpu.core_type<tc>, window_params = [{transform_indices = @transform_0, window_bounds = array<i64: 2, 1024>}, {transform_indices = @transform_1, window_bounds = array<i64: 2, 1024>}]} {
    %c0 = arith.constant 0 : index
    %c0_0 = arith.constant 0 : index
    %0 = vector.load %arg1[%c0, %c0_0] : memref<2x1024xf32, #tpu.memory_space<vmem>>, vector<2x1024xf32>
    %cst = arith.constant 0.000000e+00 : f32
    %1 = vector.broadcast %cst : f32 to vector<2x1024xf32>
    %2 = arith.subf %1, %0 : vector<2x1024xf32>
    %3 = math.exp %2 : vector<2x1024xf32>
    %cst_1 = arith.constant 1.000000e+00 : f32
    %4 = vector.broadcast %cst_1 : f32 to vector<2x1024xf32>
    %5 = arith.addf %4, %3 : vector<2x1024xf32>
    %cst_2 = arith.constant 1.000000e+00 : f32
    %6 = vector.broadcast %cst_2 : f32 to vector<2x1024xf32>
    %7 = arith.divf %6, %5 : vector<2x1024xf32>
    %8 = arith.mulf %0, %7 : vector<2x1024xf32>
    %c0_3 = arith.constant 0 : index
    %c0_4 = arith.constant 0 : index
    %9 = vector.load %arg2[%c0_3, %c0_4] : memref<2x1024xf32, #tpu.memory_space<vmem>>, vector<2x1024xf32>
    tpu.vector_store %arg2[%c0_3, %c0_4], %8 {strides = array<i32>} : memref<2x1024xf32, #tpu.memory_space<vmem>>, vector<2x1024xf32>,
    return
  }
  func.func @transform_0(%arg0: i32) -> (i32, i32) {
    %c0_i32 = arith.constant 0 : i32
    %c0_i32_0 = arith.constant 0 : i32
    return %arg0, %c0_i32 : i32, i32
  }
  func.func @transform_1(%arg0: i32) -> (i32, i32) {
    %c0_i32 = arith.constant 0 : i32
    %c0_i32_0 = arith.constant 0 : i32
    return %arg0, %c0_i32 : i32, i32
  }
}

</mosaic_0001>

<llo_original>
// kernel: tpu_custom_call.1
$region0: #{tpu_custom_call.1}
  #allocation0 [shape = 'u32[]', space=smem, size = 0x4, offset = 0x4, fixed_abs, tag = 'smem constant byte address 0x4 - core index']
  #allocation1 [shape = 'u32[144,128]{1,0:T(1,128)}', space=vmem, size = 0x12000, scoped, tag = 'internal scratch']
  %s0 = inlined_call_operand.hbm [shape: f32[2,1024], index: 0, kind: input, shape index: {}]
  %s1 = inlined_call_operand.hbm [shape: f32[2,1024], index: 1, kind: output, shape index: {}]
  %s2 = sld [smem:[#allocation0]]
  $region18: #{tpu_custom_call.1} parent=0
    _
  %s4 = ssub.s32 1, %s2
  %s5 = scalar_select 0, %s4, %s2
  $region1: #{tpu_custom_call.1} parent=0
    #allocation2 [shape = 'u8[8192]{0}', space=vmem, size = 0x2000, scoped, tag = 'input window, operand 0, single buffered']
    #allocation3 [shape = 's32[1]{0}', space=sflag, size = 0x4, scoped, tag = 'scoped memory for tpu_custom_call.1']
    #allocation4 [shape = 's32[1]{0}', space=sflag, size = 0x4, scoped, tag = 'scoped memory for tpu_custom_call.1']
    #allocation5 [shape = 'u8[8192]{0}', space=vmem, size = 0x2000, scoped, tag = 'output window, operand 0, single buffered']
    %6 = vsyncpa [#allocation3], 0
    %7 = vsyncpa [#allocation4], 0
    // Predicated region
    $region2: #{tpu_custom_call.1} parent=1 // pred_check
      _
    $region3: #{tpu_custom_call.1} parent=1 // pred_check_branch
      %9 = sbr.rel (0) target = $region5
    $region4: #{tpu_custom_call.1} parent=1 // pred_region
      %s11 = ssub.s32 256, 256
      %12 = vsyncadd [#allocation3], %s11
      %s14 = sshll.u32 [#allocation2], 4
      %s15 = int_to_ptr.vmem [resolvable:$true] %s14
      %17 = dma.hbm_to_vmem [thread:$0]  %s0, 256, %s15, [#allocation3]
    $region5: #{tpu_custom_call.1} parent=1 // pred_fallthru
      _
    // Predicated region
    $region6: #{tpu_custom_call.1} parent=1 // pred_check
      _
    $region7: #{tpu_custom_call.1} parent=1 // pred_check_branch
      %19 = sbr.rel (0) target = $region9
    $region8: #{tpu_custom_call.1} parent=1 // pred_region
      %20 = dma.done [#allocation3], 256
    $region9: #{tpu_custom_call.1} parent=1 // pred_fallthru
      _
    %v21 = vld [vmem:[#allocation2] sm:$0xff]
    %v22 = vld [vmem:[#allocation2 + $0x8] sm:$0xff]
    %v23 = vsub.f32 0.0, %v21
    %v24 = vsub.f32 0.0, %v22
    %v25 = vmul.f32 %v23, 1.442695
    %v26 = vpow.pop %v25
    %v27 = vmul.f32 %v24, 1.442695
    %v28 = vpow.pop %v27
    %v29 = vadd.f32 %v26, 1.0
    %v30 = vadd.f32 %v28, 1.0
    %v31 = vrcp.pop %v29
    %v32 = vmul.f32 1.0, %v31
    %v33 = vrcp.pop %v30
    %v34 = vmul.f32 1.0, %v33
    %v35 = vmul.f32 %v21, %v32
    %v36 = vmul.f32 %v22, %v34
    %37 = vst [vmem:[#allocation5] sm:$0xff] %v35
    %38 = vst [vmem:[#allocation5 + $0x8] sm:$0xff] %v36
    // Predicated region
    $region10: #{tpu_custom_call.1} parent=1 // pred_check
      _
    $region11: #{tpu_custom_call.1} parent=1 // pred_check_branch
      %40 = sbr.rel (0) target = $region13
    $region12: #{tpu_custom_call.1} parent=1 // pred_region
      %s42 = ssub.s32 256, 256
      %43 = vsyncadd [#allocation4], %s42
      %s45 = sshll.u32 [#allocation5], 4
      %s46 = int_to_ptr.vmem [resolvable:$true] %s45
      %48 = dma.vmem_to_hbm [thread:$0]  %s46, 256, %s1, [#allocation4]
    $region13: #{tpu_custom_call.1} parent=1 // pred_fallthru
      _
    // Predicated region
    $region14: #{tpu_custom_call.1} parent=1 // pred_check
      _
    $region15: #{tpu_custom_call.1} parent=1 // pred_check_branch
      %50 = sbr.rel (0) target = $region17
    $region16: #{tpu_custom_call.1} parent=1 // pred_region
      %51 = dma.done [#allocation4], 256
    $region17: #{tpu_custom_call.1} parent=1 // pred_fallthru
      _
    %52 = vsyncpa [#allocation3], 1
    %53 = vsyncpa [#allocation4], 1

</llo_original>
